<compile_context>
chip_gen: v7x
topology: tpu7x:2x2x1
jax: 0.10.0
libtpu: 0.0.40
codegen_flags: <defaults>
</compile_context>

<pallas_src>
import functools

import jax
import jax.numpy as jnp
from jax import lax
from jax.experimental import pallas as pl
from jax.experimental.pallas import tpu as pltpu


def _dropout_kernel(seed_ref, x_ref, o_ref, *, threshold, scale, tile_rows, n_cols):
    """One (tile_rows, N) block: counter-based hash RNG -> keep mask -> scaled select."""
    shape = x_ref.shape
    rows = pl.program_id(0) * tile_rows + lax.broadcasted_iota(jnp.int32, shape, 0)
    cols = lax.broadcasted_iota(jnp.int32, shape, 1)
    # Global element index (wraps harmlessly for huge arrays; we only need bits).
    idx = (rows * n_cols + cols).astype(jnp.uint32)

    # Counter-based hash: murmur3 fmix32 with a seed mix.  Per-element and tiling-invariant.
    h = idx ^ seed_ref[0].astype(jnp.uint32)
    h = h * jnp.uint32(0x9E3779B1)
    h = h ^ (h >> 16)
    h = h * jnp.uint32(0x85EBCA6B)
    h = h ^ (h >> 13)
    h = h * jnp.uint32(0xC2B2AE35)
    h = h ^ (h >> 16)

    # Top 31 bits as a nonnegative int32; P(keep) = threshold / 2^31 = keep_prob.
    keep = (h >> 1).astype(jnp.int32) < jnp.int32(threshold)

    xv = x_ref[...]
    scaled = xv * jnp.asarray(scale, dtype=xv.dtype)
    o_ref[...] = jnp.where(keep, scaled, jnp.zeros_like(scaled))


def dropout(x, seed, p=0.5, training=True, *, block_bytes=2 * 1024 * 1024):
    """Inverted dropout.  `x` is any shape (flattened to 2D internally); `seed` is a python int."""
    if not training or p == 0.0:
        return x
    assert 0.0 <= p < 1.0, "dropout probability must be in [0, 1)"

    keep_prob = 1.0 - p
    scale = 1.0 / keep_prob
    threshold = min(int(round(keep_prob * (1 << 31))), (1 << 31) - 1)

    orig_shape = x.shape
    x2 = x.reshape(1, -1) if x.ndim < 2 else x.reshape(-1, x.shape[-1])
    M, N = x2.shape
    itemsize = jnp.dtype(x2.dtype).itemsize

    # Block sizing: largest row-tile (multiple of the sublane packing) under ~block_bytes.
    # With double-buffered input + output this stays well inside every chip's scoped VMEM.
    pack = max(8, 32 // itemsize)                      # 8 for f32, 16 for bf16, 32 for int8
    if M * N * itemsize <= block_bytes:
        tile_rows = M                                  # single block covers everything
    else:
        tile_rows = max(pack, (block_bytes // (N * itemsize)) // pack * pack)
        tile_rows = min(tile_rows, M)
    grid = (pl.cdiv(M, tile_rows),)

    seed_arr = jnp.asarray([seed], dtype=jnp.int32)
    kernel = functools.partial(
        _dropout_kernel,
        threshold=threshold,
        scale=scale,
        tile_rows=tile_rows,
        n_cols=N,
    )

    out2 = pl.pallas_call(
        kernel,
        out_shape=jax.ShapeDtypeStruct((M, N), x2.dtype),
        grid_spec=pltpu.PrefetchScalarGridSpec(
            num_scalar_prefetch=1,                     # seed lands in SMEM
            grid=grid,
            in_specs=[pl.BlockSpec((tile_rows, N), lambda i, seed_ref: (i, 0))],
            out_specs=pl.BlockSpec((tile_rows, N), lambda i, seed_ref: (i, 0)),
        ),
        compiler_params=pltpu.CompilerParams(
            # Tiles are fully independent (counter-based RNG), so megacore sharding is safe.
            dimension_semantics=("parallel",),
        ),
    )(seed_arr, x2)

    return out2.reshape(orig_shape)


if __name__ == "__main__":
    key = jax.random.PRNGKey(0)
    batch, hidden = 16, 256
    x = jax.random.normal(key, (batch, hidden), dtype=jnp.float32)

    p = 0.5

    # Training mode: masked + rescaled.
    y_train = jax.block_until_ready(dropout(x, seed=1234, p=p, training=True))

    # Eval mode: identity.
    y_eval = jax.block_until_ready(dropout(x, seed=1234, p=p, training=False))

    # Sanity checks on semantics.
    assert y_train.shape == x.shape and y_train.dtype == x.dtype
    keep_prob = 1.0 - p
    nz = y_train != 0
    # Every surviving element equals x / keep_prob; dropped elements are 0.
    assert bool(jnp.allclose(jnp.where(nz, y_train, 0.0),
                             jnp.where(nz, x / keep_prob, 0.0), rtol=1e-6))
    # Keep-rate should be roughly keep_prob.
    keep_rate = float(jnp.mean(nz.astype(jnp.float32)))
    assert 0.35 < keep_rate < 0.65, f"unexpected keep rate {keep_rate}"
    # Eval mode is exact identity.
    assert bool(jnp.array_equal(y_eval, x))

    print("KERNEL_OK")
</pallas_src>

<mosaic_0001>
module attributes {stable_mosaic.version = 11 : i64} {
  func.func @_dropout_kernel(%arg0: i32, %arg1: memref<1xi32, #tpu.memory_space<smem>>, %arg2: memref<16x256xf32, #tpu.memory_space<vmem>>, %arg3: memref<16x256xf32, #tpu.memory_space<vmem>>) attributes {dimension_semantics = [#tpu.dimension_semantics<parallel>], iteration_bounds = array<i64: 1>, scalar_prefetch = 1 : i64, scratch_operands = 0 : i64, tpu.core_type = #tpu.core_type<tc>, window_params = [{transform_indices = @transform_0, window_bounds = array<i64: 16, 256>}, {transform_indices = @transform_1, window_bounds = array<i64: 16, 256>}]} {
    %c16_i32 = arith.constant 16 : i32
    %0 = arith.muli %arg0, %c16_i32 : i32
    %1 = tpu.iota {dimensions = array<i32: 0>} : vector<16x256xi32>
    %2 = vector.broadcast %0 : i32 to vector<16x256xi32>
    %3 = arith.addi %2, %1 : vector<16x256xi32>
    %4 = tpu.iota {dimensions = array<i32: 1>} : vector<16x256xi32>
    %c256_i32 = arith.constant 256 : i32
    %5 = vector.broadcast %c256_i32 : i32 to vector<16x256xi32>
    %6 = arith.muli %3, %5 : vector<16x256xi32>
    %7 = arith.addi %6, %4 : vector<16x256xi32>
    %c0 = arith.constant 0 : index
    %8 = memref.load %arg1[%c0] : memref<1xi32, #tpu.memory_space<smem>>
    %9 = vector.broadcast %8 : i32 to vector<16x256xi32>
    %10 = arith.xori %7, %9 : vector<16x256xi32>
    %c-1640531535_i32 = arith.constant -1640531535 : i32
    %11 = vector.broadcast %c-1640531535_i32 : i32 to vector<16x256xi32>
    %12 = arith.muli %10, %11 : vector<16x256xi32>
    %c16_i32_0 = arith.constant 16 : i32
    %13 = vector.broadcast %c16_i32_0 : i32 to vector<16x256xi32>
    %14 = arith.shrui %12, %13 : vector<16x256xi32>
    %15 = arith.xori %12, %14 : vector<16x256xi32>
    %c-2048144789_i32 = arith.constant -2048144789 : i32
    %16 = vector.broadcast %c-2048144789_i32 : i32 to vector<16x256xi32>
    %17 = arith.muli %15, %16 : vector<16x256xi32>
    %c13_i32 = arith.constant 13 : i32
    %18 = vector.broadcast %c13_i32 : i32 to vector<16x256xi32>
    %19 = arith.shrui %17, %18 : vector<16x256xi32>
    %20 = arith.xori %17, %19 : vector<16x256xi32>
    %c-1028477387_i32 = arith.constant -1028477387 : i32
    %21 = vector.broadcast %c-1028477387_i32 : i32 to vector<16x256xi32>
    %22 = arith.muli %20, %21 : vector<16x256xi32>
    %c16_i32_1 = arith.constant 16 : i32
    %23 = vector.broadcast %c16_i32_1 : i32 to vector<16x256xi32>
    %24 = arith.shrui %22, %23 : vector<16x256xi32>
    %25 = arith.xori %22, %24 : vector<16x256xi32>
    %c1_i32 = arith.constant 1 : i32
    %26 = vector.broadcast %c1_i32 : i32 to vector<16x256xi32>
    %27 = arith.shrui %25, %26 : vector<16x256xi32>
    %c1073741824_i32 = arith.constant 1073741824 : i32
    %28 = vector.broadcast %c1073741824_i32 : i32 to vector<16x256xi32>
    %29 = arith.cmpi slt, %27, %28 : vector<16x256xi32>
    %c0_2 = arith.constant 0 : index
    %c0_3 = arith.constant 0 : index
    %30 = vector.load %arg2[%c0_2, %c0_3] : memref<16x256xf32, #tpu.memory_space<vmem>>, vector<16x256xf32>
    %cst = arith.constant 2.000000e+00 : f32
    %31 = vector.broadcast %cst : f32 to vector<16x256xf32>
    %32 = arith.mulf %30, %31 : vector<16x256xf32>
    %cst_4 = arith.constant 0.000000e+00 : f32
    %33 = vector.broadcast %cst_4 : f32 to vector<16x256xf32>
    %34 = arith.select %29, %32, %33 : vector<16x256xi1>, vector<16x256xf32>
    %c0_5 = arith.constant 0 : index
    %c0_6 = arith.constant 0 : index
    %35 = vector.load %arg3[%c0_5, %c0_6] : memref<16x256xf32, #tpu.memory_space<vmem>>, vector<16x256xf32>
    tpu.vector_store %arg3[%c0_5, %c0_6], %34 {strides = array<i32>} : memref<16x256xf32, #tpu.memory_space<vmem>>, vector<16x256xf32>,
    return
  }
  func.func @transform_0(%arg0: i32, %arg1: memref<1xi32, #tpu.memory_space<smem>>) -> (i32, i32) {
    %c0_i32 = arith.constant 0 : i32
    %c0_i32_0 = arith.constant 0 : i32
    return %arg0, %c0_i32 : i32, i32
  }
  func.func @transform_1(%arg0: i32, %arg1: memref<1xi32, #tpu.memory_space<smem>>) -> (i32, i32) {
    %c0_i32 = arith.constant 0 : i32
    %c0_i32_0 = arith.constant 0 : i32
    return %arg0, %c0_i32 : i32, i32
  }
}

</mosaic_0001>

<llo_original>
// kernel: tpu_custom_call.1
$region0: #{tpu_custom_call.1}
  #allocation0 [shape = 'u32[]', space=smem, size = 0x4, offset = 0x4, fixed_abs, tag = 'smem constant byte address 0x4 - core index']
  #allocation1 [shape = 'u32[144,128]{1,0:T(1,128)}', space=vmem, size = 0x12000, scoped, tag = 'internal scratch']
  #allocation2 [shape = 's32[1]{0}', space=sflag, size = 0x4, scoped, tag = 'scoped memory for tpu_custom_call.1']
  #allocation3 [shape = 's32[1]{0:T(128)S(6)}', space=smem, size = 0x200, scoped, tag = 'prefetched SMEM operand 0']
  %s0 = inlined_call_operand.<no memory space> [shape: s32[1], index: 0, kind: input, shape index: {}]
  %s1 = inlined_call_operand.hbm [shape: f32[16,256], index: 1, kind: input, shape index: {}]
  %s2 = inlined_call_operand.hbm [shape: f32[16,256], index: 2, kind: output, shape index: {}]
  %s3 = sld [smem:[#allocation0]]
  $region18: #{tpu_custom_call.1} parent=0
    _
  %s5 = ssub.s32 1, %s3
  %s6 = scalar_select 0, %s5, %s3
  %7 = sst [smem:[#allocation3]] %s0
  $region1: #{tpu_custom_call.1} parent=0
    #allocation4 [shape = 'u8[16384]{0}', space=vmem, size = 0x4000, scoped, tag = 'input window, operand 1, single buffered']
    #allocation5 [shape = 's32[1]{0}', space=sflag, size = 0x4, scoped, tag = 'scoped memory for tpu_custom_call.1']
    #allocation6 [shape = 's32[1]{0}', space=sflag, size = 0x4, scoped, tag = 'scoped memory for tpu_custom_call.1']
    #allocation7 [shape = 'u8[16384]{0}', space=vmem, size = 0x4000, scoped, tag = 'output window, operand 0, single buffered']
    %8 = vsyncpa [#allocation5], 0
    %9 = vsyncpa [#allocation6], 0
    // Predicated region
    $region2: #{tpu_custom_call.1} parent=1 // pred_check
      _
    $region3: #{tpu_custom_call.1} parent=1 // pred_check_branch
      %11 = sbr.rel (0) target = $region5
    $region4: #{tpu_custom_call.1} parent=1 // pred_region
      %s13 = ssub.s32 512, 512
      %14 = vsyncadd [#allocation5], %s13
      %s15 = sshll.u32 [#allocation4], 4
      %s16 = int_to_ptr.vmem [resolvable:$true] %s15
      %21 = dma.hbm_to_vmem [thread:$0]  %s1, 512, %s16, [#allocation5], 256, 256, 16
    $region5: #{tpu_custom_call.1} parent=1 // pred_fallthru
      _
    // Predicated region
    $region6: #{tpu_custom_call.1} parent=1 // pred_check
      _
    $region7: #{tpu_custom_call.1} parent=1 // pred_check_branch
      %23 = sbr.rel (0) target = $region9
    $region8: #{tpu_custom_call.1} parent=1 // pred_region
      %24 = dma.done [#allocation5], 512
    $region9: #{tpu_custom_call.1} parent=1 // pred_fallthru
      _
    %s25 = smul.u32 0, 16
    %v26 = vlaneseq
    %v27 = vshrl.u32 %v26, 7
    %v28 = vadd.s32 %v27, 8
    %v29 = vstv %s25
    %v30 = vadd.s32 %v29, %v27
    %v31 = vadd.s32 %v29, %v28
    %v32 = vlaneseq
    %v33 = vand.u32 %v32, 127
    %v34 = vadd.s32 %v33, 128
    %v35 = vmul.u32 %v30, 256
    %v36 = vmul.u32 %v31, 256
    %v37 = vadd.s32 %v35, %v33
    %v38 = vadd.s32 %v35, %v34
    %v39 = vadd.s32 %v36, %v33
    %v40 = vadd.s32 %v36, %v34
    %s41 = sld [smem:[#allocation3]]
    %v42 = vstv %s41
    %v43 = vxor.u32 %v37, %v42
    %v44 = vxor.u32 %v38, %v42
    %v45 = vxor.u32 %v39, %v42
    %v46 = vxor.u32 %v40, %v42
    %v47 = vmul.u32 %v43, 2654435761
    %v48 = vmul.u32 %v44, 2654435761
    %v49 = vmul.u32 %v45, 2654435761
    %v50 = vmul.u32 %v46, 2654435761
    %v51 = vshrl.u32 %v47, 16
    %v52 = vshrl.u32 %v48, 16
    %v53 = vshrl.u32 %v49, 16
    %v54 = vshrl.u32 %v50, 16
    %v55 = vxor.u32 %v47, %v51
    %v56 = vxor.u32 %v48, %v52
    %v57 = vxor.u32 %v49, %v53
    %v58 = vxor.u32 %v50, %v54
    %v59 = vmul.u32 %v55, 2246822507
    %v60 = vmul.u32 %v56, 2246822507
    %v61 = vmul.u32 %v57, 2246822507
    %v62 = vmul.u32 %v58, 2246822507
    %v63 = vshrl.u32 %v59, 13
    %v64 = vshrl.u32 %v60, 13
    %v65 = vshrl.u32 %v61, 13
    %v66 = vshrl.u32 %v62, 13
    %v67 = vxor.u32 %v59, %v63
    %v68 = vxor.u32 %v60, %v64
    %v69 = vxor.u32 %v61, %v65
    %v70 = vxor.u32 %v62, %v66
    %v71 = vmul.u32 %v67, 3266489909
    %v72 = vmul.u32 %v68, 3266489909
    %v73 = vmul.u32 %v69, 3266489909
    %v74 = vmul.u32 %v70, 3266489909
    %v75 = vshrl.u32 %v71, 16
    %v76 = vshrl.u32 %v72, 16
    %v77 = vshrl.u32 %v73, 16
    %v78 = vshrl.u32 %v74, 16
    %v79 = vxor.u32 %v71, %v75
    %v80 = vxor.u32 %v72, %v76
    %v81 = vxor.u32 %v73, %v77
    %v82 = vxor.u32 %v74, %v78
    %v83 = vshrl.u32 %v79, 1
    %v84 = vshrl.u32 %v80, 1
    %v85 = vshrl.u32 %v81, 1
    %v86 = vshrl.u32 %v82, 1
    %vm87 = vcmp.lt.s32.totalorder %v83, 1073741824
    %vm88 = vcmp.lt.s32.totalorder %v84, 1073741824
    %vm89 = vcmp.lt.s32.totalorder %v85, 1073741824
    %vm90 = vcmp.lt.s32.totalorder %v86, 1073741824
    %v91 = vld [vmem:[#allocation4] sm:$0xff]
    %v92 = vld [vmem:[#allocation4 + $0x8] sm:$0xff]
    %v93 = vld [vmem:[#allocation4 + $0x10] sm:$0xff]
    %v94 = vld [vmem:[#allocation4 + $0x18] sm:$0xff]
    %v95 = vmul.f32 %v91, 2.0
    %v96 = vmul.f32 %v92, 2.0
    %v97 = vmul.f32 %v93, 2.0
    %v98 = vmul.f32 %v94, 2.0
    %v99 = vsel %vm87, %v95, 0.0
    %v100 = vsel %vm88, %v96, 0.0
    %v101 = vsel %vm89, %v97, 0.0
    %v102 = vsel %vm90, %v98, 0.0
    %103 = vst [vmem:[#allocation7] sm:$0xff] %v99
    %104 = vst [vmem:[#allocation7 + $0x8] sm:$0xff] %v100
    %105 = vst [vmem:[#allocation7 + $0x10] sm:$0xff] %v101
    %106 = vst [vmem:[#allocation7 + $0x18] sm:$0xff] %v102
    // Predicated region
    $region10: #{tpu_custom_call.1} parent=1 // pred_check
      _
    $region11: #{tpu_custom_call.1} parent=1 // pred_check_branch
      %108 = sbr.rel (0) target = $region13
    $region12: #{tpu_custom_call.1} parent=1 // pred_region
      %s110 = ssub.s32 512, 512
      %111 = vsyncadd [#allocation6], %s110
      %s112 = sshll.u32 [#allocation7], 4
      %s113 = int_to_ptr.vmem [resolvable:$true] %s112
      %118 = dma.vmem_to_hbm [thread:$0]  %s113, 512, %s2, [#allocation6], 256, 256, 16
    $region13: #{tpu_custom_call.1} parent=1 // pred_fallthru
      _
    // Predicated region
    $region14: #{tpu_custom_call.1} parent=1 // pred_check
      _
    $region15: #{tpu_custom_call.1} parent=1 // pred_check_branch
      %120 = sbr.rel (0) target = $region17
    $region16: #{tpu_custom_call.1} parent=1 // pred_region
      %121 = dma.done [#allocation6], 512
    $region17: #{tpu_custom_call.1} parent=1 // pred_fallthru
      _
    %122 = vsyncpa [#allocation5], 1
    %123 = vsyncpa [#allocation6], 1

</llo_original>
